<compile_context>
chip_gen: v7x
topology: tpu7x:2x2x1
jax: 0.10.0
libtpu: 0.0.40
codegen_flags: <defaults>
</compile_context>

<pallas_src>
import jax
import jax.numpy as jnp
from jax.experimental import pallas as pl
from jax.experimental.pallas import tpu as pltpu

N_FFT = 1024
HOP = 256
PAD = N_FFT // 2                # 512
MAX_TR = 4096                   # 4096 rows * 256 * 4B = 4 MiB per input buffer
                                # (8 MiB double-buffered; multiple of 128 lanes)


# ----------------------------- Pallas kernel --------------------------------
def _row_sumsq_kernel(x_ref, o_ref):
    # x_ref: (TR, HOP) hop blocks; o_ref: (1, TR) lane-dense per-row sums.
    x = x_ref[...].astype(jnp.float32)              # f32 accumulate
    xsq = x * x                                     # VPU
    half = HOP // 2
    folded = xsq[:, :half] + xsq[:, half:]          # free VPU add, 256 -> 128 lanes
    ss = jnp.sum(folded, axis=-1)                   # XLU reduce over 128 lanes
    o_ref[...] = ss[None, :].astype(o_ref.dtype)


def hop_sumsq(rows):
    """rows: (R, HOP) -> (R,) float32 per-row sum of squares (Pallas)."""
    R, N = rows.shape
    # Full dim if small (always a legal block); else 4096-row (4 MiB) tiles.
    TR = R if R <= MAX_TR else MAX_TR
    grid = (pl.cdiv(R, TR),)
    cost = pl.CostEstimate(
        flops=2 * R * N,                            # square + accumulate
        transcendentals=0,
        bytes_accessed=R * N * rows.dtype.itemsize + R * 4,
    )
    out = pl.pallas_call(
        _row_sumsq_kernel,
        out_shape=jax.ShapeDtypeStruct((1, R), jnp.float32),
        grid_spec=pltpu.PrefetchScalarGridSpec(
            num_scalar_prefetch=0,
            grid=grid,
            in_specs=[pl.BlockSpec((TR, N), lambda t: (t, 0))],
            out_specs=pl.BlockSpec((1, TR), lambda t: (0, t)),
        ),
        compiler_params=pltpu.CompilerParams(
            dimension_semantics=("parallel",)),
        cost_estimate=cost,
    )(rows)
    return out[0]                                   # (R,)


# ------------------------------- Wrappers ------------------------------------
def energy_encoder(signal):
    """EngryEncoder.forward: (B, T) -> (B, T//HOP, 1), reading the signal once.

    Padded-signal hop h (h >= 2) equals raw-signal hop (h-2), so only padded
    hops 0, 1 and F+2 touch reflected samples; those are computed in plain JAX
    from tiny forward boundary slices (sum-of-squares is order-invariant).
    """
    B, T = signal.shape
    if T < PAD + 1:
        raise ValueError(f"reflect padding requires T >= {PAD + 1}, got T={T}")
    F = T // HOP                                    # frames after dropping the last

    # ---- hot path: per-hop sum of squares of the raw signal (Pallas) --------
    interior = signal[:, :F * HOP].reshape(B * F, HOP)      # contiguous view
    q = hop_sumsq(interior).reshape(B, F)           # raw hop j = sig[j*HOP:(j+1)*HOP]

    # ---- reflect-padded boundary hops (tiny, plain JAX, forward slices) -----
    sig32 = signal.astype(jnp.float32)
    # padded hop 0 covers reflected samples sig[257..512]
    p0 = jnp.sum(sig32[:, HOP + 1:2 * HOP + 1] ** 2, axis=-1, keepdims=True)
    # padded hop 1 covers reflected samples sig[1..256]
    p1 = jnp.sum(sig32[:, 1:HOP + 1] ** 2, axis=-1, keepdims=True)
    # padded hop F+2: r raw tail samples + (HOP - r) right-reflected samples
    r = T - F * HOP
    p_last = jnp.sum(sig32[:, T - 1 - (HOP - r):T - 1] ** 2,
                     axis=-1, keepdims=True)
    if r > 0:
        p_last = p_last + jnp.sum(sig32[:, F * HOP:] ** 2,
                                  axis=-1, keepdims=True)

    # ---- combine 4 adjacent padded-hop partials per frame + sqrt ------------
    P = jnp.concatenate([p0, p1, q, p_last], axis=1)        # (B, F+3)
    acc = P[:, 0:F] + P[:, 1:F + 1] + P[:, 2:F + 2] + P[:, 3:F + 3]
    energy = jnp.sqrt(acc * (1.0 / N_FFT))
    return energy[..., None]                                 # (B, F, 1)


def encoder_forward(signal, loudness, f0):
    """Encoder.forward: returns (f0[..., None], loudness[..., None], energy)."""
    f0_out = f0[..., None]
    l_out = loudness[..., None]
    energy = energy_encoder(signal)
    return f0_out, l_out, energy


# ----------------------- Pure-JAX reference (for checking) -------------------
def extract_frames(signal, n_fft=N_FFT, hop_length=HOP, center=True):
    """Mirror of EngryEncoder.extract_frames for a (B, T) signal."""
    if center:
        pad = n_fft // 2
        signal = jnp.pad(signal, ((0, 0), (pad, pad)), mode="reflect")
    num_frames = (signal.shape[-1] - n_fft) // hop_length + 1
    idx = (jnp.arange(0, num_frames * hop_length, hop_length)[:, None]
           + jnp.arange(n_fft)[None, :])
    return signal[:, idx]                                    # (B, num_frames, n_fft)


# --------------------------------- Main --------------------------------------
if __name__ == "__main__":
    key = jax.random.PRNGKey(0)
    k1, k2, k3 = jax.random.split(key, 3)

    B = 2
    T = 2048                      # -> F = T // HOP = 8 frames
    n_frames = T // HOP

    signal = jax.random.normal(k1, (B, T), dtype=jnp.float32)
    loudness = jax.random.normal(k2, (B, n_frames), dtype=jnp.float32)
    f0 = jax.random.uniform(k3, (B, n_frames), dtype=jnp.float32) * 400.0

    fwd = jax.jit(encoder_forward)
    f0_out, l_out, energy = fwd(signal, loudness, f0)
    jax.block_until_ready((f0_out, l_out, energy))

    # sanity check against the straightforward pad + overlapping-frame reference
    frames_ref = extract_frames(signal)[:, :-1, :]
    energy_ref = jnp.sqrt(jnp.mean(frames_ref.astype(jnp.float32) ** 2,
                                   axis=-1, keepdims=True))
    assert f0_out.shape == (B, n_frames, 1)
    assert l_out.shape == (B, n_frames, 1)
    assert energy.shape == (B, n_frames, 1)
    assert jnp.allclose(f0_out[..., 0], f0)
    assert jnp.allclose(l_out[..., 0], loudness)
    assert jnp.allclose(energy, energy_ref, atol=1e-5, rtol=1e-5)

    print("KERNEL_OK")
</pallas_src>

<mosaic_0001>
module attributes {stable_mosaic.version = 11 : i64} {
  func.func @_row_sumsq_kernel(%arg0: i32, %arg1: memref<16x256xf32, #tpu.memory_space<vmem>>, %arg2: memref<1x16xf32, #tpu.memory_space<vmem>>) attributes {dimension_semantics = [#tpu.dimension_semantics<parallel>], iteration_bounds = array<i64: 1>, scalar_prefetch = 0 : i64, scratch_operands = 0 : i64, tpu.core_type = #tpu.core_type<tc>, window_params = [{transform_indices = @transform_0, window_bounds = array<i64: 16, 256>}, {transform_indices = @transform_1, window_bounds = array<i64: 1, 16>}]} {
    %c0 = arith.constant 0 : index
    %c0_0 = arith.constant 0 : index
    %0 = vector.load %arg1[%c0, %c0_0] : memref<16x256xf32, #tpu.memory_space<vmem>>, vector<16x256xf32>
    %1 = arith.mulf %0, %0 : vector<16x256xf32>
    %2 = vector.extract_strided_slice %1 {offsets = [0, 0], sizes = [16, 128], strides = [1, 1]} : vector<16x256xf32> to vector<16x128xf32>
    %3 = vector.extract_strided_slice %1 {offsets = [0, 128], sizes = [16, 128], strides = [1, 1]} : vector<16x256xf32> to vector<16x128xf32>
    %4 = arith.addf %2, %3 : vector<16x128xf32>
    %cst = arith.constant dense<0.000000e+00> : vector<16xf32>
    %5 = vector.multi_reduction <add>, %4, %cst [1] : vector<16x128xf32> to vector<16xf32>
    %6 = vector.shape_cast %5 : vector<16xf32> to vector<1x16xf32>
    %c0_1 = arith.constant 0 : index
    %c0_2 = arith.constant 0 : index
    %7 = vector.load %arg2[%c0_1, %c0_2] : memref<1x16xf32, #tpu.memory_space<vmem>>, vector<1x16xf32>
    tpu.vector_store %arg2[%c0_1, %c0_2], %6 {strides = array<i32>} : memref<1x16xf32, #tpu.memory_space<vmem>>, vector<1x16xf32>,
    return
  }
  func.func @transform_0(%arg0: i32) -> (i32, i32) {
    %c0_i32 = arith.constant 0 : i32
    %c0_i32_0 = arith.constant 0 : i32
    return %arg0, %c0_i32 : i32, i32
  }
  func.func @transform_1(%arg0: i32) -> (i32, i32) {
    %c0_i32 = arith.constant 0 : i32
    %c0_i32_0 = arith.constant 0 : i32
    return %c0_i32, %arg0 : i32, i32
  }
}

</mosaic_0001>

<llo_original>
// kernel: squeeze.1
$region0: #{squeeze.1}
  %s0 = inlined_call_operand.vmem [shape: f32[16], index: 0, kind: input, shape index: {}]
  %s1 = inlined_call_operand.vmem [shape: f32[2,8], index: 1, kind: output, shape index: {}]
  $region1: #{squeeze.1} parent=0
    #allocation0 [shape = 'u8[4096]{0}', space=vmem, size = 0x1000, scoped, tag = 'scoped mem for output reshape']
    #allocation1 [shape = 'u8[4096]{0}', space=vmem, size = 0x1000, scoped, tag = 'scoped mem for input reshape']
    %s3 = sshllo.u32 0, 1
    %v4 = vld [vmem:[%s0] sm:%s3]
    %5 = vst [vmem:[#allocation1] sm:%s3] %v4
    %v6 = vld [vmem:[#allocation1] sm:$0x1]
    %vm7 = vcmask 64512
    %8 = vst.msk [vmem:[#allocation0] sm:$0x1] %vm7, %v6
    %v9 = vld [vmem:[#allocation1] sm:$0x1]
    %10 = vrot.lane.b32.xlu0 %v9, 120
    %v11 = vpop.permute.xlu0 %10
    %vm12 = vcmask 64512
    %s13 = scalar_lea.vmem [#allocation0], 1
    %14 = vst.msk [vmem:[%s13] sm:$0x1] %vm12, %v11
    %s16 = sshllo.u32 0, 2
    %v18 = vld [vmem:[#allocation0] sm:%s16]
    %s19 = sshllo.u32 0, 2
    %20 = vst [vmem:[%s1] sm:%s19] %v18

// kernel: encoder_forward.1
$region0: #{encoder_forward.1}
  #allocation0 [shape = 'u32[]', space=smem, size = 0x4, offset = 0x4, fixed_abs, tag = 'smem constant byte address 0x4 - core index']
  #allocation1 [shape = 'u32[144,128]{1,0:T(1,128)}', space=vmem, size = 0x12000, scoped, tag = 'internal scratch']
  %s0 = inlined_call_operand.vmem [shape: f32[16,256], index: 0, kind: input, shape index: {}]
  %s1 = inlined_call_operand.vmem [shape: f32[1,16], index: 1, kind: output, shape index: {}]
  %s2 = sld [smem:[#allocation0]]
  $region14: #{encoder_forward.1} parent=0
    _
  %s4 = ssub.s32 1, %s2
  %s5 = scalar_select 0, %s4, %s2
  // Predicated region
  $region2: #{encoder_forward.1} parent=0 // pred_check
    _
  $region3: #{encoder_forward.1} parent=0 // pred_check_branch
    %7 = sbr.rel (0) target = $region5
  $region4: #{encoder_forward.1} parent=0 // pred_region
    _
  $region5: #{encoder_forward.1} parent=0 // pred_fallthru
    _
  %v8 = vld [vmem:[%s0] sm:$0xff]
  %v9 = vld [vmem:[%s0 + $0x8] sm:$0xff]
  %v10 = vld [vmem:[%s0 + $0x10] sm:$0xff]
  %v11 = vld [vmem:[%s0 + $0x18] sm:$0xff]
  %v12 = vmul.f32 %v8, %v8
  %v13 = vmul.f32 %v9, %v9
  %v14 = vmul.f32 %v10, %v10
  %v15 = vmul.f32 %v11, %v11
  %v16 = vadd.f32 %v12, %v13
  %v17 = vadd.f32 %v14, %v15
  %18 = vadd.xlane.f32.xlu0 %v16
  %v19 = vpop.xlane.xlu0 %18
  %20 = vadd.xlane.f32.xlu0 %v17
  %v21 = vpop.xlane.xlu0 %20
  %v24 = vlaneseq
  %v25 = vand.u32 %v24, 127
  %v26 = vlaneseq
  %v27 = vshrl.u32 %v26, 7
  %v28 = vsub.s32 %v25, %v27
  %v29 = vrot.slane %v19, %v28
  %v30 = vadd.s32 %v25, 4294967288
  %v31 = vlaneseq
  %v32 = vshrl.u32 %v31, 7
  %v33 = vsub.s32 %v30, %v32
  %v34 = vrot.slane %v21, %v33
  %vm35 = vcmask 130112
  %v36 = vsel %vm35, %v34, %v29
  %vm38 = vcmask 122880
  %39 = vst.msk [vmem:[%s1] sm:$0x1] %vm38, %v36
  // Predicated region
  $region6: #{encoder_forward.1} parent=0 // pred_check
    _
  $region7: #{encoder_forward.1} parent=0 // pred_check_branch
    %41 = sbr.rel (0) target = $region9
  $region8: #{encoder_forward.1} parent=0 // pred_region
    _
  $region9: #{encoder_forward.1} parent=0 // pred_fallthru
    _
  // Predicated region
  $region10: #{encoder_forward.1} parent=0 // pred_check
    _
  $region11: #{encoder_forward.1} parent=0 // pred_check_branch
    %43 = sbr.rel (0) target = $region13
  $region12: #{encoder_forward.1} parent=0 // pred_region
    _
  $region13: #{encoder_forward.1} parent=0 // pred_fallthru
    _

</llo_original>
